<compile_context>
chip_gen: v6e
topology: v6e:2x2x1
jax: 0.10.0
libtpu: 0.0.40
codegen_flags: <defaults>
</compile_context>

<pallas_src>
import jax
import jax.numpy as jnp
from jax.experimental import pallas as pl
from jax.experimental.pallas import tpu as pltpu

HIDDEN = 4        # hiddenLen
IN_LEN = 1        # inputLen
NEG_SLOPE = 0.01  # F.leaky_relu default negative_slope
LANES = 128       # TPU lane width
MAX_BLOCK_ROWS = 4096  # keeps double-buffered tiles under v5e's 16 MiB scoped VMEM


def _leaky(v):
    # Exact leaky_relu for 0 < slope < 1: max(v, slope*v) (one mul + one max).
    return jnp.maximum(v, NEG_SLOPE * v)


def square_kernel(p_ref, x_ref, o_ref):
    """p_ref: (27,) f32 in SMEM.  x_ref / o_ref: (block_rows, 128) lane-dense tiles.

    Param layout (flattened):
      [0:4)   A_j   = w12_j * w13_j
      [4:8)   B_j   = w11_j + w12_j*b13_j + w13_j*b12_j
      [8:12)  C_j   = b11_j + b12_j*b13_j
      [12:16) w31_j
      [16:20) w32_j
      [20:24) w33_j
      24,25,26 = b31, b32, b33
    """
    x = x_ref[...]

    a31 = None
    a32 = None
    a33 = None
    for j in range(HIDDEN):
        # Folded layer 1 in Horner form: h_j = leaky((A_j*x + B_j)*x + C_j)
        h = _leaky((p_ref[j] * x + p_ref[HIDDEN + j]) * x
                   + p_ref[2 * HIDDEN + j])
        # Layer 2 reduction over H, unrolled as scalar*vector accumulates.
        t31 = p_ref[3 * HIDDEN + j] * h
        t32 = p_ref[4 * HIDDEN + j] * h
        t33 = p_ref[5 * HIDDEN + j] * h
        if j == 0:
            a31, a32, a33 = t31, t32, t33
        else:
            a31 = a31 + t31
            a32 = a32 + t32
            a33 = a33 + t33

    a31 = a31 + p_ref[6 * HIDDEN + 0]
    a32 = a32 + p_ref[6 * HIDDEN + 1]
    a33 = a33 + p_ref[6 * HIDDEN + 2]

    o_ref[...] = _leaky(a31 + a32 * a33).astype(o_ref.dtype)


def pack_params(w1, b1, w3, b3):
    """Fold layer-1 (Linear(1->H)) params and flatten everything to a (27,) f32."""
    w11, w12, w13 = w1[0, 0], w1[1, 0], w1[2, 0]   # (H,)
    b11, b12, b13 = b1[0, 0], b1[1, 0], b1[2, 0]   # (H,)
    A = w12 * w13
    Bc = w11 + w12 * b13 + w13 * b12
    C = b11 + b12 * b13
    w31, w32, w33 = w3[0, 0], w3[1, 0], w3[2, 0]   # (H,)
    bias3 = jnp.array([b3[0, 0, 0], b3[1, 0, 0], b3[2, 0, 0]], jnp.float32)
    return jnp.concatenate([A, Bc, C, w31, w32, w33, bias3]).astype(jnp.float32)


def _choose_block_rows(rows, block_rows):
    """Pick sublane-aligned block rows: big tiles, but >=2 grid steps when possible."""
    if rows < 8:
        return rows                       # block == full row extent (tiny batch)
    if rows <= block_rows:
        # Split small/medium batches in ~half so both v7x TensorCores get work.
        br = max(8, (((rows + 15) // 16) * 16) // 2)
    else:
        br = block_rows
    return ((br + 7) // 8) * 8


def square_forward(x, w1, b1, w3, b3, *, block_rows=MAX_BLOCK_ROWS):
    """x: (B, 1) float32 -> (B, 1) float32."""
    B = x.shape[0]
    block_rows = min(block_rows, MAX_BLOCK_ROWS)   # v5e scoped-VMEM safety
    params = pack_params(w1, b1, w3, b3)           # (27,) f32, lives in SMEM

    flat = x.reshape(-1)                           # free (contiguous)
    rows = pl.cdiv(B, LANES)
    ragged = (B % LANES) != 0
    if ragged:
        # Tail-only pad (< 128 zeros appended); the common B % 128 == 0 case
        # below is completely copy-free on both input and output.
        flat_in = jnp.pad(flat, (0, rows * LANES - B))
    else:
        flat_in = flat
    xs = flat_in.reshape(rows, LANES)

    br = _choose_block_rows(rows, block_rows)
    grid = (pl.cdiv(rows, br),)                    # partial last block is fine

    out = pl.pallas_call(
        square_kernel,
        out_shape=jax.ShapeDtypeStruct((rows, LANES), x.dtype),
        grid=grid,
        in_specs=[
            pl.BlockSpec(memory_space=pltpu.MemorySpace.SMEM),   # params (whole, SMEM)
            pl.BlockSpec((br, LANES), lambda i: (i, 0)),          # x tile
        ],
        out_specs=pl.BlockSpec((br, LANES), lambda i: (i, 0)),
        compiler_params=pltpu.CompilerParams(
            dimension_semantics=("parallel",)),
    )(params, xs)

    flat_out = out.reshape(-1)
    if ragged:
        flat_out = flat_out[:B]
    return flat_out.reshape(B, IN_LEN)


def init_params(key):
    """Deterministic init matching nn.Linear's U(-1/sqrt(fan_in), 1/sqrt(fan_in))."""
    k = jax.random.split(key, 12)
    bound1 = 1.0 / jnp.sqrt(float(IN_LEN))   # layer-1 fan_in = 1
    bound3 = 1.0 / jnp.sqrt(float(HIDDEN))   # layer-2 fan_in = 4

    # l11, l12, l13: weight (H, 1) -> store W.T as (1, H); bias (H,) -> (1, H)
    w1 = jnp.stack([
        jax.random.uniform(k[i], (IN_LEN, HIDDEN), jnp.float32, -bound1, bound1)
        for i in range(3)
    ])                                        # (3, 1, H)
    b1 = jnp.stack([
        jax.random.uniform(k[3 + i], (1, HIDDEN), jnp.float32, -bound1, bound1)
        for i in range(3)
    ])                                        # (3, 1, H)

    # l31, l32, l33: weight (1, H) -> store as (1, H); bias (1,) -> (1, 1)
    w3 = jnp.stack([
        jax.random.uniform(k[6 + i], (1, HIDDEN), jnp.float32, -bound3, bound3)
        for i in range(3)
    ])                                        # (3, 1, H)
    b3 = jnp.stack([
        jax.random.uniform(k[9 + i], (1, 1), jnp.float32, -bound3, bound3)
        for i in range(3)
    ])                                        # (3, 1, 1)
    return w1, b1, w3, b3


def reference_forward(x, w1, b1, w3, b3):
    """Pure-JAX reference matching the original (unfolded) PyTorch math."""
    def lrelu(v):
        return jnp.where(v >= 0, v, NEG_SLOPE * v)
    a11 = x @ w1[0] + b1[0]
    a12 = x @ w1[1] + b1[1]
    a13 = x @ w1[2] + b1[2]
    h = lrelu(a11 + a12 * a13)
    a31 = h @ w3[0].T + b3[0]
    a32 = h @ w3[1].T + b3[1]
    a33 = h @ w3[2].T + b3[2]
    return lrelu(a31 + a32 * a33)


if __name__ == "__main__":
    key = jax.random.PRNGKey(0)
    kx, kp = jax.random.split(key)
    w1, b1, w3, b3 = init_params(kp)

    # Primary small example matching the module's (B, 1) input.
    batch = 8
    x = jax.random.normal(kx, (batch, IN_LEN), dtype=jnp.float32)
    out = jax.block_until_ready(square_forward(x, w1, b1, w3, b3))
    ref = reference_forward(x, w1, b1, w3, b3)
    assert out.shape == (batch, IN_LEN)
    assert jnp.allclose(out, ref, atol=1e-5, rtol=1e-5), (out, ref)

    # Extra coverage per review: ragged tail spanning multiple grid steps
    # (B=5000 -> 40 rows, 2 blocks) and the copy-free fast path with 2 grid
    # steps (B=2048 -> 16 rows, 2 blocks).
    for b in (5000, 2048):
        xt = jax.random.normal(jax.random.PRNGKey(b), (b, IN_LEN), jnp.float32)
        o = jax.block_until_ready(square_forward(xt, w1, b1, w3, b3))
        r = reference_forward(xt, w1, b1, w3, b3)
        assert o.shape == (b, IN_LEN)
        assert jnp.allclose(o, r, atol=1e-5, rtol=1e-5)

    print("KERNEL_OK")
</pallas_src>

<mosaic_0001>
module attributes {stable_mosaic.version = 11 : i64} {
  func.func @square_kernel(%arg0: i32, %arg1: memref<27xf32, #tpu.memory_space<smem>>, %arg2: memref<1x128xf32, #tpu.memory_space<vmem>>, %arg3: memref<1x128xf32, #tpu.memory_space<vmem>>) attributes {dimension_semantics = [#tpu.dimension_semantics<parallel>], iteration_bounds = array<i64: 1>, scalar_prefetch = 0 : i64, scratch_operands = 0 : i64, tpu.core_type = #tpu.core_type<tc>, window_params = [{transform_indices = @transform_0, window_bounds = array<i64: 27>}, {transform_indices = @transform_1, window_bounds = array<i64: 1, 128>}, {transform_indices = @transform_2, window_bounds = array<i64: 1, 128>}]} {
    %c0 = arith.constant 0 : index
    %c0_0 = arith.constant 0 : index
    %0 = vector.load %arg2[%c0, %c0_0] : memref<1x128xf32, #tpu.memory_space<vmem>>, vector<1x128xf32>
    %c0_1 = arith.constant 0 : index
    %1 = memref.load %arg1[%c0_1] : memref<27xf32, #tpu.memory_space<smem>>
    %2 = vector.broadcast %1 : f32 to vector<1x128xf32>
    %3 = arith.mulf %2, %0 : vector<1x128xf32>
    %c4 = arith.constant 4 : index
    %4 = memref.load %arg1[%c4] : memref<27xf32, #tpu.memory_space<smem>>
    %5 = vector.broadcast %4 : f32 to vector<1x128xf32>
    %6 = arith.addf %3, %5 : vector<1x128xf32>
    %7 = arith.mulf %6, %0 : vector<1x128xf32>
    %c8 = arith.constant 8 : index
    %8 = memref.load %arg1[%c8] : memref<27xf32, #tpu.memory_space<smem>>
    %9 = vector.broadcast %8 : f32 to vector<1x128xf32>
    %10 = arith.addf %7, %9 : vector<1x128xf32>
    %cst = arith.constant 0.00999999977 : f32
    %11 = vector.broadcast %cst : f32 to vector<1x128xf32>
    %12 = arith.mulf %11, %10 : vector<1x128xf32>
    %13 = arith.maximumf %10, %12 : vector<1x128xf32>
    %c12 = arith.constant 12 : index
    %14 = memref.load %arg1[%c12] : memref<27xf32, #tpu.memory_space<smem>>
    %15 = vector.broadcast %14 : f32 to vector<1x128xf32>
    %16 = arith.mulf %15, %13 : vector<1x128xf32>
    %c16 = arith.constant 16 : index
    %17 = memref.load %arg1[%c16] : memref<27xf32, #tpu.memory_space<smem>>
    %18 = vector.broadcast %17 : f32 to vector<1x128xf32>
    %19 = arith.mulf %18, %13 : vector<1x128xf32>
    %c20 = arith.constant 20 : index
    %20 = memref.load %arg1[%c20] : memref<27xf32, #tpu.memory_space<smem>>
    %21 = vector.broadcast %20 : f32 to vector<1x128xf32>
    %22 = arith.mulf %21, %13 : vector<1x128xf32>
    %c1 = arith.constant 1 : index
    %23 = memref.load %arg1[%c1] : memref<27xf32, #tpu.memory_space<smem>>
    %24 = vector.broadcast %23 : f32 to vector<1x128xf32>
    %25 = arith.mulf %24, %0 : vector<1x128xf32>
    %c5 = arith.constant 5 : index
    %26 = memref.load %arg1[%c5] : memref<27xf32, #tpu.memory_space<smem>>
    %27 = vector.broadcast %26 : f32 to vector<1x128xf32>
    %28 = arith.addf %25, %27 : vector<1x128xf32>
    %29 = arith.mulf %28, %0 : vector<1x128xf32>
    %c9 = arith.constant 9 : index
    %30 = memref.load %arg1[%c9] : memref<27xf32, #tpu.memory_space<smem>>
    %31 = vector.broadcast %30 : f32 to vector<1x128xf32>
    %32 = arith.addf %29, %31 : vector<1x128xf32>
    %cst_2 = arith.constant 0.00999999977 : f32
    %33 = vector.broadcast %cst_2 : f32 to vector<1x128xf32>
    %34 = arith.mulf %33, %32 : vector<1x128xf32>
    %35 = arith.maximumf %32, %34 : vector<1x128xf32>
    %c13 = arith.constant 13 : index
    %36 = memref.load %arg1[%c13] : memref<27xf32, #tpu.memory_space<smem>>
    %37 = vector.broadcast %36 : f32 to vector<1x128xf32>
    %38 = arith.mulf %37, %35 : vector<1x128xf32>
    %c17 = arith.constant 17 : index
    %39 = memref.load %arg1[%c17] : memref<27xf32, #tpu.memory_space<smem>>
    %40 = vector.broadcast %39 : f32 to vector<1x128xf32>
    %41 = arith.mulf %40, %35 : vector<1x128xf32>
    %c21 = arith.constant 21 : index
    %42 = memref.load %arg1[%c21] : memref<27xf32, #tpu.memory_space<smem>>
    %43 = vector.broadcast %42 : f32 to vector<1x128xf32>
    %44 = arith.mulf %43, %35 : vector<1x128xf32>
    %45 = arith.addf %16, %38 : vector<1x128xf32>
    %46 = arith.addf %19, %41 : vector<1x128xf32>
    %47 = arith.addf %22, %44 : vector<1x128xf32>
    %c2 = arith.constant 2 : index
    %48 = memref.load %arg1[%c2] : memref<27xf32, #tpu.memory_space<smem>>
    %49 = vector.broadcast %48 : f32 to vector<1x128xf32>
    %50 = arith.mulf %49, %0 : vector<1x128xf32>
    %c6 = arith.constant 6 : index
    %51 = memref.load %arg1[%c6] : memref<27xf32, #tpu.memory_space<smem>>
    %52 = vector.broadcast %51 : f32 to vector<1x128xf32>
    %53 = arith.addf %50, %52 : vector<1x128xf32>
    %54 = arith.mulf %53, %0 : vector<1x128xf32>
    %c10 = arith.constant 10 : index
    %55 = memref.load %arg1[%c10] : memref<27xf32, #tpu.memory_space<smem>>
    %56 = vector.broadcast %55 : f32 to vector<1x128xf32>
    %57 = arith.addf %54, %56 : vector<1x128xf32>
    %cst_3 = arith.constant 0.00999999977 : f32
    %58 = vector.broadcast %cst_3 : f32 to vector<1x128xf32>
    %59 = arith.mulf %58, %57 : vector<1x128xf32>
    %60 = arith.maximumf %57, %59 : vector<1x128xf32>
    %c14 = arith.constant 14 : index
    %61 = memref.load %arg1[%c14] : memref<27xf32, #tpu.memory_space<smem>>
    %62 = vector.broadcast %61 : f32 to vector<1x128xf32>
    %63 = arith.mulf %62, %60 : vector<1x128xf32>
    %c18 = arith.constant 18 : index
    %64 = memref.load %arg1[%c18] : memref<27xf32, #tpu.memory_space<smem>>
    %65 = vector.broadcast %64 : f32 to vector<1x128xf32>
    %66 = arith.mulf %65, %60 : vector<1x128xf32>
    %c22 = arith.constant 22 : index
    %67 = memref.load %arg1[%c22] : memref<27xf32, #tpu.memory_space<smem>>
    %68 = vector.broadcast %67 : f32 to vector<1x128xf32>
    %69 = arith.mulf %68, %60 : vector<1x128xf32>
    %70 = arith.addf %45, %63 : vector<1x128xf32>
    %71 = arith.addf %46, %66 : vector<1x128xf32>
    %72 = arith.addf %47, %69 : vector<1x128xf32>
    %c3 = arith.constant 3 : index
    %73 = memref.load %arg1[%c3] : memref<27xf32, #tpu.memory_space<smem>>
    %74 = vector.broadcast %73 : f32 to vector<1x128xf32>
    %75 = arith.mulf %74, %0 : vector<1x128xf32>
    %c7 = arith.constant 7 : index
    %76 = memref.load %arg1[%c7] : memref<27xf32, #tpu.memory_space<smem>>
    %77 = vector.broadcast %76 : f32 to vector<1x128xf32>
    %78 = arith.addf %75, %77 : vector<1x128xf32>
    %79 = arith.mulf %78, %0 : vector<1x128xf32>
    %c11 = arith.constant 11 : index
    %80 = memref.load %arg1[%c11] : memref<27xf32, #tpu.memory_space<smem>>
    %81 = vector.broadcast %80 : f32 to vector<1x128xf32>
    %82 = arith.addf %79, %81 : vector<1x128xf32>
    %cst_4 = arith.constant 0.00999999977 : f32
    %83 = vector.broadcast %cst_4 : f32 to vector<1x128xf32>
    %84 = arith.mulf %83, %82 : vector<1x128xf32>
    %85 = arith.maximumf %82, %84 : vector<1x128xf32>
    %c15 = arith.constant 15 : index
    %86 = memref.load %arg1[%c15] : memref<27xf32, #tpu.memory_space<smem>>
    %87 = vector.broadcast %86 : f32 to vector<1x128xf32>
    %88 = arith.mulf %87, %85 : vector<1x128xf32>
    %c19 = arith.constant 19 : index
    %89 = memref.load %arg1[%c19] : memref<27xf32, #tpu.memory_space<smem>>
    %90 = vector.broadcast %89 : f32 to vector<1x128xf32>
    %91 = arith.mulf %90, %85 : vector<1x128xf32>
    %c23 = arith.constant 23 : index
    %92 = memref.load %arg1[%c23] : memref<27xf32, #tpu.memory_space<smem>>
    %93 = vector.broadcast %92 : f32 to vector<1x128xf32>
    %94 = arith.mulf %93, %85 : vector<1x128xf32>
    %95 = arith.addf %70, %88 : vector<1x128xf32>
    %96 = arith.addf %71, %91 : vector<1x128xf32>
    %97 = arith.addf %72, %94 : vector<1x128xf32>
    %c24 = arith.constant 24 : index
    %98 = memref.load %arg1[%c24] : memref<27xf32, #tpu.memory_space<smem>>
    %99 = vector.broadcast %98 : f32 to vector<1x128xf32>
    %100 = arith.addf %95, %99 : vector<1x128xf32>
    %c25 = arith.constant 25 : index
    %101 = memref.load %arg1[%c25] : memref<27xf32, #tpu.memory_space<smem>>
    %102 = vector.broadcast %101 : f32 to vector<1x128xf32>
    %103 = arith.addf %96, %102 : vector<1x128xf32>
    %c26 = arith.constant 26 : index
    %104 = memref.load %arg1[%c26] : memref<27xf32, #tpu.memory_space<smem>>
    %105 = vector.broadcast %104 : f32 to vector<1x128xf32>
    %106 = arith.addf %97, %105 : vector<1x128xf32>
    %107 = arith.mulf %103, %106 : vector<1x128xf32>
    %108 = arith.addf %100, %107 : vector<1x128xf32>
    %cst_5 = arith.constant 0.00999999977 : f32
    %109 = vector.broadcast %cst_5 : f32 to vector<1x128xf32>
    %110 = arith.mulf %109, %108 : vector<1x128xf32>
    %111 = arith.maximumf %108, %110 : vector<1x128xf32>
    %c0_6 = arith.constant 0 : index
    %c0_7 = arith.constant 0 : index
    %112 = vector.load %arg3[%c0_6, %c0_7] : memref<1x128xf32, #tpu.memory_space<vmem>>, vector<1x128xf32>
    tpu.vector_store %arg3[%c0_6, %c0_7], %111 {strides = array<i32>} : memref<1x128xf32, #tpu.memory_space<vmem>>, vector<1x128xf32>,
    return
  }
  func.func @transform_0(%arg0: i32) -> i32 {
    %c0_i32 = arith.constant 0 : i32
    %c0_i32_0 = arith.constant 0 : i32
    return %c0_i32 : i32
  }
  func.func @transform_1(%arg0: i32) -> (i32, i32) {
    %c0_i32 = arith.constant 0 : i32
    %c0_i32_0 = arith.constant 0 : i32
    return %arg0, %c0_i32 : i32, i32
  }
  func.func @transform_2(%arg0: i32) -> (i32, i32) {
    %c0_i32 = arith.constant 0 : i32
    %c0_i32_0 = arith.constant 0 : i32
    return %arg0, %c0_i32 : i32, i32
  }
}

</mosaic_0001>

<llo_original>
// kernel: tpu_custom_call.1
$region0: #{tpu_custom_call.1}
  #allocation0 [shape = 'u32[]', space=smem, size = 0x4, offset = 0x4, fixed_abs, tag = 'smem constant byte address 0x4 - core index']
  #allocation1 [shape = 'u32[144,128]{1,0:T(1,128)}', space=vmem, size = 0x12000, scoped, tag = 'internal scratch']
  %s0 = inlined_call_operand.hbm [shape: f32[27], index: 0, kind: input, shape index: {}]
  %s1 = inlined_call_operand.vmem [shape: f32[1,128], index: 1, kind: input, shape index: {}]
  %s2 = inlined_call_operand.hbm [shape: f32[1,128], index: 2, kind: output, shape index: {}]
  %s3 = sld [smem:[#allocation0]]
  $region22: #{tpu_custom_call.1} parent=0
    _
  %s5 = ssub.s32 1, %s3
  %s6 = scalar_select 0, %s5, %s3
  $region1: #{tpu_custom_call.1} parent=0
    #allocation2 [shape = 'u8[512]{0}', space=smem, size = 0x200, scoped, tag = 'input window, operand 0, single buffered']
    #allocation3 [shape = 's32[1]{0}', space=sflag, size = 0x4, scoped, tag = 'scoped memory for tpu_custom_call.1']
    #allocation4 [shape = 's32[1]{0}', space=sflag, size = 0x4, scoped, tag = 'scoped memory for tpu_custom_call.1']
    #allocation5 [shape = 'u8[512]{0}', space=vmem, size = 0x400, scoped, tag = 'output window, operand 0, single buffered']
    %7 = vsyncpa [#allocation4], 0
    %8 = vsyncpa [#allocation3], 0
    // Predicated region
    $region2: #{tpu_custom_call.1} parent=1 // pred_check
      _
    $region3: #{tpu_custom_call.1} parent=1 // pred_check_branch
      %10 = sbr.rel (0) target = $region5
    $region4: #{tpu_custom_call.1} parent=1 // pred_region
      %s12 = ssub.s32 16, 16
      %13 = vsyncadd [#allocation4], %s12
      %16 = dma.hbm_to_smem %s0, 16, [#allocation2], [#allocation4]
    $region5: #{tpu_custom_call.1} parent=1 // pred_fallthru
      _
    // Predicated region
    $region6: #{tpu_custom_call.1} parent=1 // pred_check
      _
    $region7: #{tpu_custom_call.1} parent=1 // pred_check_branch
      %18 = sbr.rel (0) target = $region9
    $region8: #{tpu_custom_call.1} parent=1 // pred_region
      _
    $region9: #{tpu_custom_call.1} parent=1 // pred_fallthru
      _
    // Predicated region
    $region10: #{tpu_custom_call.1} parent=1 // pred_check
      _
    $region11: #{tpu_custom_call.1} parent=1 // pred_check_branch
      %20 = sbr.rel (0) target = $region13
    $region12: #{tpu_custom_call.1} parent=1 // pred_region
      %21 = dma.done [#allocation4], 16
    $region13: #{tpu_custom_call.1} parent=1 // pred_fallthru
      _
    %22 = sfence
    %v23 = vld [vmem:[%s1] sm:$0x1]
    %s24 = sld [smem:[#allocation2]]
    %v25 = vstv %s24
    %v26 = vmul.f32 %v25, %v23
    %s27 = sld [smem:[#allocation2 + $0x4]]
    %v28 = vstv %s27
    %v29 = vadd.f32 %v26, %v28
    %v30 = vmul.f32 %v29, %v23
    %s31 = sld [smem:[#allocation2 + $0x8]]
    %v32 = vstv %s31
    %v33 = vadd.f32 %v30, %v32
    %v34 = vmul.f32 %v33, 0.01
    %v35 = vmax.f32 %v33, %v34
    %s36 = sld [smem:[#allocation2 + $0xc]]
    %v37 = vstv %s36
    %v38 = vmul.f32 %v37, %v35
    %s39 = sld [smem:[#allocation2 + $0x10]]
    %v40 = vstv %s39
    %v41 = vmul.f32 %v40, %v35
    %s42 = sld [smem:[#allocation2 + $0x14]]
    %v43 = vstv %s42
    %v44 = vmul.f32 %v43, %v35
    %s45 = sld [smem:[#allocation2 + $0x1]]
    %v46 = vstv %s45
    %v47 = vmul.f32 %v46, %v23
    %s48 = sld [smem:[#allocation2 + $0x5]]
    %v49 = vstv %s48
    %v50 = vadd.f32 %v47, %v49
    %v51 = vmul.f32 %v50, %v23
    %s52 = sld [smem:[#allocation2 + $0x9]]
    %v53 = vstv %s52
    %v54 = vadd.f32 %v51, %v53
    %v55 = vmul.f32 %v54, 0.01
    %v56 = vmax.f32 %v54, %v55
    %s57 = sld [smem:[#allocation2 + $0xd]]
    %v58 = vstv %s57
    %v59 = vmul.f32 %v58, %v56
    %s60 = sld [smem:[#allocation2 + $0x11]]
    %v61 = vstv %s60
    %v62 = vmul.f32 %v61, %v56
    %s63 = sld [smem:[#allocation2 + $0x15]]
    %v64 = vstv %s63
    %v65 = vmul.f32 %v64, %v56
    %v66 = vadd.f32 %v38, %v59
    %v67 = vadd.f32 %v41, %v62
    %v68 = vadd.f32 %v44, %v65
    %s69 = sld [smem:[#allocation2 + $0x2]]
    %v70 = vstv %s69
    %v71 = vmul.f32 %v70, %v23
    %s72 = sld [smem:[#allocation2 + $0x6]]
    %v73 = vstv %s72
    %v74 = vadd.f32 %v71, %v73
    %v75 = vmul.f32 %v74, %v23
    %s76 = sld [smem:[#allocation2 + $0xa]]
    %v77 = vstv %s76
    %v78 = vadd.f32 %v75, %v77
    %v79 = vmul.f32 %v78, 0.01
    %v80 = vmax.f32 %v78, %v79
    %s81 = sld [smem:[#allocation2 + $0xe]]
    %v82 = vstv %s81
    %v83 = vmul.f32 %v82, %v80
    %s84 = sld [smem:[#allocation2 + $0x12]]
    %v85 = vstv %s84
    %v86 = vmul.f32 %v85, %v80
    %s87 = sld [smem:[#allocation2 + $0x16]]
    %v88 = vstv %s87
    %v89 = vmul.f32 %v88, %v80
    %v90 = vadd.f32 %v66, %v83
    %v91 = vadd.f32 %v67, %v86
    %v92 = vadd.f32 %v68, %v89
    %s93 = sld [smem:[#allocation2 + $0x3]]
    %v94 = vstv %s93
    %v95 = vmul.f32 %v94, %v23
    %s96 = sld [smem:[#allocation2 + $0x7]]
    %v97 = vstv %s96
    %v98 = vadd.f32 %v95, %v97
    %v99 = vmul.f32 %v98, %v23
    %s100 = sld [smem:[#allocation2 + $0xb]]
    %v101 = vstv %s100
    %v102 = vadd.f32 %v99, %v101
    %v103 = vmul.f32 %v102, 0.01
    %v104 = vmax.f32 %v102, %v103
    %s105 = sld [smem:[#allocation2 + $0xf]]
    %v106 = vstv %s105
    %v107 = vmul.f32 %v106, %v104
    %s108 = sld [smem:[#allocation2 + $0x13]]
    %v109 = vstv %s108
    %v110 = vmul.f32 %v109, %v104
    %s111 = sld [smem:[#allocation2 + $0x17]]
    %v112 = vstv %s111
    %v113 = vmul.f32 %v112, %v104
    %v114 = vadd.f32 %v90, %v107
    %v115 = vadd.f32 %v91, %v110
    %v116 = vadd.f32 %v92, %v113
    %s117 = sld [smem:[#allocation2 + $0x18]]
    %v118 = vstv %s117
    %v119 = vadd.f32 %v114, %v118
    %s120 = sld [smem:[#allocation2 + $0x19]]
    %v121 = vstv %s120
    %v122 = vadd.f32 %v115, %v121
    %s123 = sld [smem:[#allocation2 + $0x1a]]
    %v124 = vstv %s123
    %v125 = vadd.f32 %v116, %v124
    %v126 = vmul.f32 %v122, %v125
    %v127 = vadd.f32 %v119, %v126
    %v128 = vmul.f32 %v127, 0.01
    %v129 = vmax.f32 %v127, %v128
    %130 = vst [vmem:[#allocation5] sm:$0x1] %v129
    // Predicated region
    $region14: #{tpu_custom_call.1} parent=1 // pred_check
      _
    $region15: #{tpu_custom_call.1} parent=1 // pred_check_branch
      %132 = sbr.rel (0) target = $region17
    $region16: #{tpu_custom_call.1} parent=1 // pred_region
      %s134 = ssub.s32 16, 16
      %135 = vsyncadd [#allocation3], %s134
      %s137 = sshll.u32 [#allocation5], 4
      %s138 = int_to_ptr.vmem [resolvable:$true] %s137
      %140 = dma.vmem_to_hbm [thread:$0]  %s138, 16, %s2, [#allocation3]
    $region17: #{tpu_custom_call.1} parent=1 // pred_fallthru
      _
    // Predicated region
    $region18: #{tpu_custom_call.1} parent=1 // pred_check
      _
    $region19: #{tpu_custom_call.1} parent=1 // pred_check_branch
      %142 = sbr.rel (0) target = $region21
    $region20: #{tpu_custom_call.1} parent=1 // pred_region
      %143 = dma.done [#allocation3], 16
    $region21: #{tpu_custom_call.1} parent=1 // pred_fallthru
      _
    %144 = vsyncpa [#allocation3], 1
    %145 = vsyncpa [#allocation4], 1

</llo_original>
